<compile_context>
chip_gen: v5e
topology: v5e:2x2
jax: 0.10.0
libtpu: 0.0.40
codegen_flags: <defaults>
</compile_context>

<pallas_src>
import functools

import jax
import jax.numpy as jnp
from jax.experimental import pallas as pl
from jax.experimental.pallas import tpu as pltpu

# TODO(synk): num_classes is data-dependent (LabelEncoder on an external CSV) in the
# reference; fixed to 4 here.
NUM_CLASSES = 4
IN_FEATURES = 10
LANE = 128  # TPU lane width; all feature axes are zero-padded to this.


def mlp_kernel(x_ref, w1_ref, b1_ref, w2_ref, b2_ref, w3_ref, b3_ref,
               w4_ref, b4_ref, o_ref):
    # x_ref: (TB, LANE) bf16 ; w*_ref: (LANE, LANE) bf16 ; b*_ref: (1, LANE) f32.
    x = x_ref[...]

    h = jnp.dot(x, w1_ref[...], preferred_element_type=jnp.float32) + b1_ref[...]
    h = jnp.maximum(h, 0.0).astype(jnp.bfloat16)

    h = jnp.dot(h, w2_ref[...], preferred_element_type=jnp.float32) + b2_ref[...]
    h = jnp.maximum(h, 0.0).astype(jnp.bfloat16)

    h = jnp.dot(h, w3_ref[...], preferred_element_type=jnp.float32) + b3_ref[...]
    h = jnp.maximum(h, 0.0).astype(jnp.bfloat16)

    logits = jnp.dot(h, w4_ref[...], preferred_element_type=jnp.float32) + b4_ref[...]

    # Numerically stable softmax over the first NUM_CLASSES lanes only
    # (remaining lanes are zero padding and must not enter the denominator).
    lane_idx = jax.lax.broadcasted_iota(jnp.int32, logits.shape, dimension=1)
    valid = lane_idx < NUM_CLASSES
    masked = jnp.where(valid, logits, jnp.float32(-1e30))
    m = jnp.max(masked, axis=-1, keepdims=True)
    e = jnp.where(valid, jnp.exp(masked - m), 0.0)
    inv = pl.reciprocal(jnp.sum(e, axis=-1, keepdims=True), approx=True)
    o_ref[...] = e * inv


def _round_up(x, m):
    return ((x + m - 1) // m) * m


@functools.partial(jax.jit, static_argnames=("block_batch",))
def mlp_forward(x, kernel_params, *, block_batch=512):
    """x: (batch, IN_FEATURES) f32. Returns (batch, NUM_CLASSES) f32 softmax probs."""
    (w1, b1, w2, b2, w3, b3, w4, b4) = kernel_params
    batch, feat = x.shape

    # Lane-pad input features and cast the matmul operand to bf16 (halves x DMA bytes).
    x_pad = jnp.pad(x, ((0, 0), (0, LANE - feat))).astype(jnp.bfloat16)

    # Batch tile: multiple of 8 sublanes; cap against VMEM budget (fine even for v7x 64 MiB:
    # double-buffered (TB,128) f32 out + bf16 in tiles are well under 1 MiB at TB=512).
    tb = min(block_batch, _round_up(batch, 8))
    padded_batch = _round_up(batch, tb)
    x_pad = jnp.pad(x_pad, ((0, padded_batch - batch), (0, 0)))

    grid = (padded_batch // tb,)
    row_spec = pl.BlockSpec((tb, LANE), lambda i: (i, 0))        # moving x / out tiles
    w_spec = pl.BlockSpec((LANE, LANE), lambda i: (0, 0))        # VMEM-resident weights
    b_spec = pl.BlockSpec((1, LANE), lambda i: (0, 0))           # VMEM-resident biases

    cost = pl.CostEstimate(
        flops=2 * padded_batch * LANE * LANE * 4,
        transcendentals=padded_batch * (NUM_CLASSES + 1),
        bytes_accessed=(padded_batch * LANE * 2          # x (bf16)
                        + padded_batch * LANE * 4        # out (f32)
                        + 4 * LANE * LANE * 2            # weights (bf16)
                        + 4 * LANE * 4),                 # biases (f32)
    )

    out = pl.pallas_call(
        mlp_kernel,
        out_shape=jax.ShapeDtypeStruct((padded_batch, LANE), jnp.float32),
        grid=grid,
        in_specs=[row_spec,
                  w_spec, b_spec,
                  w_spec, b_spec,
                  w_spec, b_spec,
                  w_spec, b_spec],
        out_specs=row_spec,
        compiler_params=pltpu.CompilerParams(
            dimension_semantics=("parallel",)),
        cost_estimate=cost,
    )(x_pad, w1, b1, w2, b2, w3, b3, w4, b4)

    return out[:batch, :NUM_CLASSES]


def init_linear(key, fan_in, fan_out):
    """Mimics PyTorch nn.Linear default init: U(-1/sqrt(fan_in), +1/sqrt(fan_in))."""
    kw, kb = jax.random.split(key)
    bound = 1.0 / jnp.sqrt(float(fan_in))
    w = jax.random.uniform(kw, (fan_in, fan_out), jnp.float32, -bound, bound)  # [in, out]
    b = jax.random.uniform(kb, (fan_out,), jnp.float32, -bound, bound)
    return w, b


def make_params(key):
    """Returns (raw_params for f32 reference, lane-padded bf16/f32 params for the kernel)."""
    keys = jax.random.split(key, 4)
    dims = [(IN_FEATURES, 20), (20, 15), (15, 20), (20, NUM_CLASSES)]
    raw = [init_linear(k, fi, fo) for k, (fi, fo) in zip(keys, dims)]

    kernel_params = []
    for w, b in raw:
        w_pad = jnp.zeros((LANE, LANE), jnp.float32).at[:w.shape[0], :w.shape[1]].set(w)
        b_pad = jnp.zeros((1, LANE), jnp.float32).at[0, :b.shape[0]].set(b)
        kernel_params.append(w_pad.astype(jnp.bfloat16))  # bf16 MXU operand
        kernel_params.append(b_pad)                       # bias stays f32
    return raw, tuple(kernel_params)


def mlp_reference(x, raw_params):
    (w1, b1), (w2, b2), (w3, b3), (w4, b4) = raw_params
    h = jnp.maximum(x @ w1 + b1, 0.0)
    h = jnp.maximum(h @ w2 + b2, 0.0)
    h = jnp.maximum(h @ w3 + b3, 0.0)
    return jax.nn.softmax(h @ w4 + b4, axis=1)


if __name__ == "__main__":
    key = jax.random.PRNGKey(0)
    kx, kp = jax.random.split(key)

    batch = 16
    x = jax.random.normal(kx, (batch, IN_FEATURES), jnp.float32)
    raw_params, kernel_params = make_params(kp)

    out = mlp_forward(x, kernel_params)
    out = jax.block_until_ready(out)

    ref = mlp_reference(x, raw_params)
    assert out.shape == (batch, NUM_CLASSES)
    # bf16 matmul operands + approx reciprocal => looser tolerance vs the f32 reference.
    assert jnp.allclose(out, ref, atol=2e-2, rtol=2e-2)
    assert jnp.allclose(jnp.sum(out, axis=1), 1.0, atol=1e-2)

    print("KERNEL_OK")
</pallas_src>

<mosaic_0001>
module attributes {stable_mosaic.version = 11 : i64} {
  func.func @mlp_kernel(%arg0: i32, %arg1: memref<16x128xbf16, #tpu.memory_space<vmem>>, %arg2: memref<128x128xbf16, #tpu.memory_space<vmem>>, %arg3: memref<1x128xf32, #tpu.memory_space<vmem>>, %arg4: memref<128x128xbf16, #tpu.memory_space<vmem>>, %arg5: memref<1x128xf32, #tpu.memory_space<vmem>>, %arg6: memref<128x128xbf16, #tpu.memory_space<vmem>>, %arg7: memref<1x128xf32, #tpu.memory_space<vmem>>, %arg8: memref<128x128xbf16, #tpu.memory_space<vmem>>, %arg9: memref<1x128xf32, #tpu.memory_space<vmem>>, %arg10: memref<16x128xf32, #tpu.memory_space<vmem>>) attributes {dimension_semantics = [#tpu.dimension_semantics<parallel>], iteration_bounds = array<i64: 1>, scalar_prefetch = 0 : i64, scratch_operands = 0 : i64, tpu.core_type = #tpu.core_type<tc>, window_params = [{transform_indices = @transform_0, window_bounds = array<i64: 16, 128>}, {pipeline_mode = #tpu.pipeline_mode<synchronous>, transform_indices = @transform_1, window_bounds = array<i64: 128, 128>}, {pipeline_mode = #tpu.pipeline_mode<synchronous>, transform_indices = @transform_2, window_bounds = array<i64: 1, 128>}, {pipeline_mode = #tpu.pipeline_mode<synchronous>, transform_indices = @transform_3, window_bounds = array<i64: 128, 128>}, {pipeline_mode = #tpu.pipeline_mode<synchronous>, transform_indices = @transform_4, window_bounds = array<i64: 1, 128>}, {pipeline_mode = #tpu.pipeline_mode<synchronous>, transform_indices = @transform_5, window_bounds = array<i64: 128, 128>}, {pipeline_mode = #tpu.pipeline_mode<synchronous>, transform_indices = @transform_6, window_bounds = array<i64: 1, 128>}, {pipeline_mode = #tpu.pipeline_mode<synchronous>, transform_indices = @transform_7, window_bounds = array<i64: 128, 128>}, {pipeline_mode = #tpu.pipeline_mode<synchronous>, transform_indices = @transform_8, window_bounds = array<i64: 1, 128>}, {transform_indices = @transform_9, window_bounds = array<i64: 16, 128>}]} {
    %c0 = arith.constant 0 : index
    %c0_0 = arith.constant 0 : index
    %0 = vector.load %arg1[%c0, %c0_0] : memref<16x128xbf16, #tpu.memory_space<vmem>>, vector<16x128xbf16>
    %c0_1 = arith.constant 0 : index
    %c0_2 = arith.constant 0 : index
    %1 = vector.load %arg2[%c0_1, %c0_2] : memref<128x128xbf16, #tpu.memory_space<vmem>>, vector<128x128xbf16>
    %cst = arith.constant dense<0.000000e+00> : vector<16x128xf32>
    %2 = tpu.matmul %0, %1, %cst {dimension_numbers = #tpu.dot_dimension_numbers<[1], [0], [0], [1], [0, 0, 1, 1], [], []>} : vector<16x128xbf16>, vector<128x128xbf16>, vector<16x128xf32> -> vector<16x128xf32>
    %c0_3 = arith.constant 0 : index
    %c0_4 = arith.constant 0 : index
    %3 = vector.load %arg3[%c0_3, %c0_4] : memref<1x128xf32, #tpu.memory_space<vmem>>, vector<1x128xf32>
    %4 = vector.broadcast %3 : vector<1x128xf32> to vector<16x128xf32>
    %5 = arith.addf %2, %4 : vector<16x128xf32>
    %cst_5 = arith.constant 0.000000e+00 : f32
    %6 = vector.broadcast %cst_5 : f32 to vector<16x128xf32>
    %7 = arith.maximumf %5, %6 : vector<16x128xf32>
    %8 = arith.truncf %7 : vector<16x128xf32> to vector<16x128xbf16>
    %c0_6 = arith.constant 0 : index
    %c0_7 = arith.constant 0 : index
    %9 = vector.load %arg4[%c0_6, %c0_7] : memref<128x128xbf16, #tpu.memory_space<vmem>>, vector<128x128xbf16>
    %cst_8 = arith.constant dense<0.000000e+00> : vector<16x128xf32>
    %10 = tpu.matmul %8, %9, %cst_8 {dimension_numbers = #tpu.dot_dimension_numbers<[1], [0], [0], [1], [0, 0, 1, 1], [], []>} : vector<16x128xbf16>, vector<128x128xbf16>, vector<16x128xf32> -> vector<16x128xf32>
    %c0_9 = arith.constant 0 : index
    %c0_10 = arith.constant 0 : index
    %11 = vector.load %arg5[%c0_9, %c0_10] : memref<1x128xf32, #tpu.memory_space<vmem>>, vector<1x128xf32>
    %12 = vector.broadcast %11 : vector<1x128xf32> to vector<16x128xf32>
    %13 = arith.addf %10, %12 : vector<16x128xf32>
    %cst_11 = arith.constant 0.000000e+00 : f32
    %14 = vector.broadcast %cst_11 : f32 to vector<16x128xf32>
    %15 = arith.maximumf %13, %14 : vector<16x128xf32>
    %16 = arith.truncf %15 : vector<16x128xf32> to vector<16x128xbf16>
    %c0_12 = arith.constant 0 : index
    %c0_13 = arith.constant 0 : index
    %17 = vector.load %arg6[%c0_12, %c0_13] : memref<128x128xbf16, #tpu.memory_space<vmem>>, vector<128x128xbf16>
    %cst_14 = arith.constant dense<0.000000e+00> : vector<16x128xf32>
    %18 = tpu.matmul %16, %17, %cst_14 {dimension_numbers = #tpu.dot_dimension_numbers<[1], [0], [0], [1], [0, 0, 1, 1], [], []>} : vector<16x128xbf16>, vector<128x128xbf16>, vector<16x128xf32> -> vector<16x128xf32>
    %c0_15 = arith.constant 0 : index
    %c0_16 = arith.constant 0 : index
    %19 = vector.load %arg7[%c0_15, %c0_16] : memref<1x128xf32, #tpu.memory_space<vmem>>, vector<1x128xf32>
    %20 = vector.broadcast %19 : vector<1x128xf32> to vector<16x128xf32>
    %21 = arith.addf %18, %20 : vector<16x128xf32>
    %cst_17 = arith.constant 0.000000e+00 : f32
    %22 = vector.broadcast %cst_17 : f32 to vector<16x128xf32>
    %23 = arith.maximumf %21, %22 : vector<16x128xf32>
    %24 = arith.truncf %23 : vector<16x128xf32> to vector<16x128xbf16>
    %c0_18 = arith.constant 0 : index
    %c0_19 = arith.constant 0 : index
    %25 = vector.load %arg8[%c0_18, %c0_19] : memref<128x128xbf16, #tpu.memory_space<vmem>>, vector<128x128xbf16>
    %cst_20 = arith.constant dense<0.000000e+00> : vector<16x128xf32>
    %26 = tpu.matmul %24, %25, %cst_20 {dimension_numbers = #tpu.dot_dimension_numbers<[1], [0], [0], [1], [0, 0, 1, 1], [], []>} : vector<16x128xbf16>, vector<128x128xbf16>, vector<16x128xf32> -> vector<16x128xf32>
    %c0_21 = arith.constant 0 : index
    %c0_22 = arith.constant 0 : index
    %27 = vector.load %arg9[%c0_21, %c0_22] : memref<1x128xf32, #tpu.memory_space<vmem>>, vector<1x128xf32>
    %28 = vector.broadcast %27 : vector<1x128xf32> to vector<16x128xf32>
    %29 = arith.addf %26, %28 : vector<16x128xf32>
    %30 = tpu.iota {dimensions = array<i32: 1>} : vector<16x128xi32>
    %c4_i32 = arith.constant 4 : i32
    %31 = vector.broadcast %c4_i32 : i32 to vector<16x128xi32>
    %32 = arith.cmpi slt, %30, %31 : vector<16x128xi32>
    %cst_23 = arith.constant -1.000000e+30 : f32
    %33 = vector.broadcast %cst_23 : f32 to vector<16x128xf32>
    %34 = arith.select %32, %29, %33 : vector<16x128xi1>, vector<16x128xf32>
    %cst_24 = arith.constant dense<0xFF800000> : vector<16xf32>
    %35 = vector.multi_reduction <maximumf>, %34, %cst_24 [1] : vector<16x128xf32> to vector<16xf32>
    %36 = vector.shape_cast %35 : vector<16xf32> to vector<16x1xf32>
    %37 = vector.broadcast %36 : vector<16x1xf32> to vector<16x128xf32>
    %38 = arith.subf %34, %37 : vector<16x128xf32>
    %39 = math.exp %38 : vector<16x128xf32>
    %cst_25 = arith.constant 0.000000e+00 : f32
    %40 = vector.broadcast %cst_25 : f32 to vector<16x128xf32>
    %41 = arith.select %32, %39, %40 : vector<16x128xi1>, vector<16x128xf32>
    %cst_26 = arith.constant dense<0.000000e+00> : vector<16xf32>
    %42 = vector.multi_reduction <add>, %41, %cst_26 [1] : vector<16x128xf32> to vector<16xf32>
    %43 = vector.shape_cast %42 : vector<16xf32> to vector<16x1xf32>
    %44 = tpu.reciprocal %43 {approx = true} : vector<16x1xf32> -> vector<16x1xf32>
    %45 = vector.broadcast %44 : vector<16x1xf32> to vector<16x128xf32>
    %46 = arith.mulf %41, %45 : vector<16x128xf32>
    %c0_27 = arith.constant 0 : index
    %c0_28 = arith.constant 0 : index
    %47 = vector.load %arg10[%c0_27, %c0_28] : memref<16x128xf32, #tpu.memory_space<vmem>>, vector<16x128xf32>
    tpu.vector_store %arg10[%c0_27, %c0_28], %46 {strides = array<i32>} : memref<16x128xf32, #tpu.memory_space<vmem>>, vector<16x128xf32>,
    return
  }
  func.func @transform_0(%arg0: i32) -> (i32, i32) {
    %c0_i32 = arith.constant 0 : i32
    %c0_i32_0 = arith.constant 0 : i32
    return %arg0, %c0_i32 : i32, i32
  }
  func.func @transform_1(%arg0: i32) -> (i32, i32) {
    %c0_i32 = arith.constant 0 : i32
    %c0_i32_0 = arith.constant 0 : i32
    %c0_i32_1 = arith.constant 0 : i32
    return %c0_i32, %c0_i32_0 : i32, i32
  }
  func.func @transform_2(%arg0: i32) -> (i32, i32) {
    %c0_i32 = arith.constant 0 : i32
    %c0_i32_0 = arith.constant 0 : i32
    %c0_i32_1 = arith.constant 0 : i32
    return %c0_i32, %c0_i32_0 : i32, i32
  }
  func.func @transform_3(%arg0: i32) -> (i32, i32) {
    %c0_i32 = arith.constant 0 : i32
    %c0_i32_0 = arith.constant 0 : i32
    %c0_i32_1 = arith.constant 0 : i32
    return %c0_i32, %c0_i32_0 : i32, i32
  }
  func.func @transform_4(%arg0: i32) -> (i32, i32) {
    %c0_i32 = arith.constant 0 : i32
    %c0_i32_0 = arith.constant 0 : i32
    %c0_i32_1 = arith.constant 0 : i32
    return %c0_i32, %c0_i32_0 : i32, i32
  }
  func.func @transform_5(%arg0: i32) -> (i32, i32) {
    %c0_i32 = arith.constant 0 : i32
    %c0_i32_0 = arith.constant 0 : i32
    %c0_i32_1 = arith.constant 0 : i32
    return %c0_i32, %c0_i32_0 : i32, i32
  }
  func.func @transform_6(%arg0: i32) -> (i32, i32) {
    %c0_i32 = arith.constant 0 : i32
    %c0_i32_0 = arith.constant 0 : i32
    %c0_i32_1 = arith.constant 0 : i32
    return %c0_i32, %c0_i32_0 : i32, i32
  }
  func.func @transform_7(%arg0: i32) -> (i32, i32) {
    %c0_i32 = arith.constant 0 : i32
    %c0_i32_0 = arith.constant 0 : i32
    %c0_i32_1 = arith.constant 0 : i32
    return %c0_i32, %c0_i32_0 : i32, i32
  }
  func.func @transform_8(%arg0: i32) -> (i32, i32) {
    %c0_i32 = arith.constant 0 : i32
    %c0_i32_0 = arith.constant 0 : i32
    %c0_i32_1 = arith.constant 0 : i32
    return %c0_i32, %c0_i32_0 : i32, i32
  }
  func.func @transform_9(%arg0: i32) -> (i32, i32) {
    %c0_i32 = arith.constant 0 : i32
    %c0_i32_0 = arith.constant 0 : i32
    return %arg0, %c0_i32 : i32, i32
  }
}

</mosaic_0001>

<llo_original>
// kernel: mlp_forward.1
$region0: #{mlp_forward.1}
  #allocation0 [shape = 'u32[]', space=smem, size = 0x4, offset = 0x4, fixed_abs, tag = 'smem constant byte address 0x4 - core index']
  #allocation1 [shape = 'u32[72,128]{1,0:T(1,128)}', space=vmem, size = 0x9000, scoped, tag = 'internal scratch']
  %s0 = inlined_call_operand.vmem [shape: bf16[16,128], index: 0, kind: input, shape index: {}]
  %s1 = inlined_call_operand.hbm [shape: bf16[128,128], index: 1, kind: input, shape index: {}]
  %s2 = inlined_call_operand.vmem [shape: f32[1,128], index: 2, kind: input, shape index: {}]
  %s3 = inlined_call_operand.hbm [shape: bf16[128,128], index: 3, kind: input, shape index: {}]
  %s4 = inlined_call_operand.vmem [shape: f32[1,128], index: 4, kind: input, shape index: {}]
  %s5 = inlined_call_operand.hbm [shape: bf16[128,128], index: 5, kind: input, shape index: {}]
  %s6 = inlined_call_operand.vmem [shape: f32[1,128], index: 6, kind: input, shape index: {}]
  %s7 = inlined_call_operand.hbm [shape: bf16[128,128], index: 7, kind: input, shape index: {}]
  %s8 = inlined_call_operand.vmem [shape: f32[1,128], index: 8, kind: input, shape index: {}]
  %s9 = inlined_call_operand.vmem [shape: f32[16,128], index: 9, kind: output, shape index: {}]
  %s10 = sld [smem:[#allocation0]]
  $region62: #{mlp_forward.1} parent=0
    _
  %s12 = ssub.s32 1, %s10
  %s13 = scalar_select 0, %s12, %s10
  $region1: #{mlp_forward.1} parent=0
    #allocation2 [shape = 'u8[32768]{0}', space=vmem, size = 0x8000, scoped, tag = 'input window, operand 1, single buffered']
    #allocation3 [shape = 's32[1]{0}', space=sflag, size = 0x4, scoped, tag = 'scoped memory for mlp_forward.1']
    #allocation4 [shape = 'u8[32768]{0}', space=vmem, size = 0x8000, scoped, tag = 'input window, operand 3, single buffered']
    #allocation5 [shape = 's32[1]{0}', space=sflag, size = 0x4, scoped, tag = 'scoped memory for mlp_forward.1']
    #allocation6 [shape = 'u8[32768]{0}', space=vmem, size = 0x8000, scoped, tag = 'input window, operand 5, single buffered']
    #allocation7 [shape = 'u8[32768]{0}', space=vmem, size = 0x8000, scoped, tag = 'input window, operand 7, single buffered']
    #allocation8 [shape = 's32[1]{0}', space=sflag, size = 0x4, scoped, tag = 'scoped memory for mlp_forward.1']
    %14 = vsyncpa [#allocation3], 0
    %15 = vsyncpa [#allocation5], 0
    %16 = vsyncpa [#allocation8], 0
    // Predicated region
    $region2: #{mlp_forward.1} parent=1 // pred_check
      _
    $region3: #{mlp_forward.1} parent=1 // pred_check_branch
      %18 = sbr.rel (0) target = $region5
    $region4: #{mlp_forward.1} parent=1 // pred_region
      _
    $region5: #{mlp_forward.1} parent=1 // pred_fallthru
      _
    // Predicated region
    $region6: #{mlp_forward.1} parent=1 // pred_check
      _
    $region7: #{mlp_forward.1} parent=1 // pred_check_branch
      %20 = sbr.rel (0) target = $region9
    $region8: #{mlp_forward.1} parent=1 // pred_region
      %22 = vsyncadd [#allocation3], 0
      %s23 = sshll.u32 %s1, 4
      %s24 = int_to_ptr.hbm [resolvable:$true] %s23
      %s25 = sshll.u32 [#allocation2], 4
      %s26 = int_to_ptr.vmem [resolvable:$true] %s25
      %31 = dma.hbm_to_vmem [thread:$0]  %s24, 1024, %s26, [#allocation3], 64, 64, 4
    $region9: #{mlp_forward.1} parent=1 // pred_fallthru
      _
    // Predicated region
    $region10: #{mlp_forward.1} parent=1 // pred_check
      _
    $region11: #{mlp_forward.1} parent=1 // pred_check_branch
      %33 = sbr.rel (0) target = $region13
    $region12: #{mlp_forward.1} parent=1 // pred_region
      _
    $region13: #{mlp_forward.1} parent=1 // pred_fallthru
      _
    // Predicated region
    $region14: #{mlp_forward.1} parent=1 // pred_check
      _
    $region15: #{mlp_forward.1} parent=1 // pred_check_branch
      %35 = sbr.rel (0) target = $region17
    $region16: #{mlp_forward.1} parent=1 // pred_region
      %37 = vsyncadd [#allocation5], 0
      %s38 = sshll.u32 %s3, 4
      %s39 = int_to_ptr.hbm [resolvable:$true] %s38
      %s40 = sshll.u32 [#allocation4], 4
      %s41 = int_to_ptr.vmem [resolvable:$true] %s40
      %46 = dma.hbm_to_vmem [thread:$0]  %s39, 1024, %s41, [#allocation5], 64, 64, 4
    $region17: #{mlp_forward.1} parent=1 // pred_fallthru
      _
    // Predicated region
    $region18: #{mlp_forward.1} parent=1 // pred_check
      _
    $region19: #{mlp_forward.1} parent=1 // pred_check_branch
      %48 = sbr.rel (0) target = $region21
    $region20: #{mlp_forward.1} parent=1 // pred_region
      _
    $region21: #{mlp_forward.1} parent=1 // pred_fallthru
      _
    // Predicated region
    $region22: #{mlp_forward.1} parent=1 // pred_check
      _
    $region23: #{mlp_forward.1} parent=1 // pred_check_branch
      %50 = sbr.rel (0) target = $region25
    $region24: #{mlp_forward.1} parent=1 // pred_region
      %52 = vsyncadd [#allocation5], 0
      %s53 = sshll.u32 %s5, 4
      %s54 = int_to_ptr.hbm [resolvable:$true] %s53
      %s55 = sshll.u32 [#allocation6], 4
      %s56 = int_to_ptr.vmem [resolvable:$true] %s55
      %61 = dma.hbm_to_vmem [thread:$0]  %s54, 1024, %s56, [#allocation5], 64, 64, 4
    $region25: #{mlp_forward.1} parent=1 // pred_fallthru
      _
    // Predicated region
    $region26: #{mlp_forward.1} parent=1 // pred_check
      _
    $region27: #{mlp_forward.1} parent=1 // pred_check_branch
      %63 = sbr.rel (0) target = $region29
    $region28: #{mlp_forward.1} parent=1 // pred_region
      _
    $region29: #{mlp_forward.1} parent=1 // pred_fallthru
      _
    // Predicated region
    $region30: #{mlp_forward.1} parent=1 // pred_check
      _
    $region31: #{mlp_forward.1} parent=1 // pred_check_branch
      %65 = sbr.rel (0) target = $region33
    $region32: #{mlp_forward.1} parent=1 // pred_region
      %67 = vsyncadd [#allocation8], 0
      %s68 = sshll.u32 %s7, 4
      %s69 = int_to_ptr.hbm [resolvable:$true] %s68
      %s70 = sshll.u32 [#allocation7], 4
      %s71 = int_to_ptr.vmem [resolvable:$true] %s70
      %76 = dma.hbm_to_vmem [thread:$0]  %s69, 1024, %s71, [#allocation8], 64, 64, 4
    $region33: #{mlp_forward.1} parent=1 // pred_fallthru
      _
    // Predicated region
    $region34: #{mlp_forward.1} parent=1 // pred_check
      _
    $region35: #{mlp_forward.1} parent=1 // pred_check_branch
      %78 = sbr.rel (0) target = $region37
    $region36: #{mlp_forward.1} parent=1 // pred_region
      _
    $region37: #{mlp_forward.1} parent=1 // pred_fallthru
      _
    // Predicated region
    $region38: #{mlp_forward.1} parent=1 // pred_check
      _
    $region39: #{mlp_forward.1} parent=1 // pred_check_branch
      %80 = sbr.rel (0) target = $region41
    $region40: #{mlp_forward.1} parent=1 // pred_region
      %82 = dma.done [#allocation3], 1024
    $region41: #{mlp_forward.1} parent=1 // pred_fallthru
      _
    // Predicated region
    $region42: #{mlp_forward.1} parent=1 // pred_check
      _
    $region43: #{mlp_forward.1} parent=1 // pred_check_branch
      %84 = sbr.rel (0) target = $region45
    $region44: #{mlp_forward.1} parent=1 // pred_region
      %86 = dma.done [#allocation5], 1024
    $region45: #{mlp_forward.1} parent=1 // pred_fallthru
      _
    // Predicated region
    $region46: #{mlp_forward.1} parent=1 // pred_check
      _
    $region47: #{mlp_forward.1} parent=1 // pred_check_branch
      %88 = sbr.rel (0) target = $region49
    $region48: #{mlp_forward.1} parent=1 // pred_region
      %90 = dma.done [#allocation5], 1024
    $region49: #{mlp_forward.1} parent=1 // pred_fallthru
      _
    // Predicated region
    $region50: #{mlp_forward.1} parent=1 // pred_check
      _
    $region51: #{mlp_forward.1} parent=1 // pred_check_branch
      %92 = sbr.rel (0) target = $region53
    $region52: #{mlp_forward.1} parent=1 // pred_region
      %94 = dma.done [#allocation8], 1024
    $region53: #{mlp_forward.1} parent=1 // pred_fallthru
      _
    %v95 = vld [vmem:[%s0] sm:$0xf]
    %v96 = vld [vmem:[%s0 + $0x4] sm:$0xf]
    %v97 = vld [vmem:[#allocation2] sm:$0xf]
    %v98 = vld [vmem:[#allocation2 + $0x4] sm:$0xf]
    %v99 = vld [vmem:[#allocation2 + $0x8] sm:$0xf]
    %v100 = vld [vmem:[#allocation2 + $0xc] sm:$0xf]
    %v101 = vld [vmem:[#allocation2 + $0x10] sm:$0xf]
    %v102 = vld [vmem:[#allocation2 + $0x14] sm:$0xf]
    %v103 = vld [vmem:[#allocation2 + $0x18] sm:$0xf]
    %v104 = vld [vmem:[#allocation2 + $0x1c] sm:$0xf]
    %v105 = vld [vmem:[#allocation2 + $0x20] sm:$0xf]
    %v106 = vld [vmem:[#allocation2 + $0x24] sm:$0xf]
    %v107 = vld [vmem:[#allocation2 + $0x28] sm:$0xf]
    %v108 = vld [vmem:[#allocation2 + $0x2c] sm:$0xf]
    %v109 = vld [vmem:[#allocation2 + $0x30] sm:$0xf]
    %v110 = vld [vmem:[#allocation2 + $0x34] sm:$0xf]
    %v111 = vld [vmem:[#allocation2 + $0x38] sm:$0xf]
    %v112 = vld [vmem:[#allocation2 + $0x3c] sm:$0xf]
    %v113 = vld [vmem:[%s2] sm:$0x1]
    %v115 = vperm.slane %v113, 0
    %v119 = vunpack.c.l.b16 %v95
    %v120 = vunpack.c.l.b16 %v96
    %v121 = vpack.c.b16 %v120, %v119
    %v139 = vunpack.c.l.b16 %v97
    %v140 = vunpack.c.l.b16 %v98
    %v141 = vunpack.c.l.b16 %v99
    %v142 = vunpack.c.l.b16 %v100
    %v143 = vunpack.c.l.b16 %v101
    %v144 = vunpack.c.l.b16 %v102
    %v145 = vunpack.c.l.b16 %v103
    %v146 = vunpack.c.l.b16 %v104
    %v147 = vunpack.c.l.b16 %v105
    %v148 = vunpack.c.l.b16 %v106
    %v149 = vunpack.c.l.b16 %v107
    %v150 = vunpack.c.l.b16 %v108
    %v151 = vunpack.c.l.b16 %v109
    %v152 = vunpack.c.l.b16 %v110
    %v153 = vunpack.c.l.b16 %v111
    %v154 = vunpack.c.l.b16 %v112
    %v155 = vpack.c.b16 %v140, %v139
    %v156 = vpack.c.b16 %v142, %v141
    %v157 = vpack.c.b16 %v144, %v143
    %v158 = vpack.c.b16 %v146, %v145
    %v159 = vpack.c.b16 %v148, %v147
    %v160 = vpack.c.b16 %v150, %v149
    %v161 = vpack.c.b16 %v152, %v151
    %v162 = vpack.c.b16 %v154, %v153
    %171 = vmatpush.bf16.msra.mxu0 %v162
    %172 = vmatpush.bf16.msra.mxu0 %v161
    %173 = vmatpush.bf16.msra.mxu0 %v160
    %174 = vmatpush.bf16.msra.mxu0 %v159
    %175 = vmatpush.bf16.msra.mxu0 %v158
    %176 = vmatpush.bf16.msra.mxu0 %v157
    %177 = vmatpush.bf16.msra.mxu0 %v156
    %178 = vmatpush.bf16.msra.mxu0 %v155
    %179 = vmatmul.bf16.gmra.mxu0 %v121
    %v180 = vpop.f32.mrf.mxu0
    %v181 = vadd.f32 %v115, %v180
    %v182 = vpop.f32.mrf.mxu0
    %v183 = vadd.f32 %v115, %v182
    %184 = vdwg.mxu0
    %v185 = vmax.f32 %v181, 0.0
    %v186 = vmax.f32 %v183, 0.0
    %v187 = vpack.c.bf16 %v186, %v185
    %v188 = vld [vmem:[#allocation4] sm:$0xf]
    %v189 = vld [vmem:[#allocation4 + $0x4] sm:$0xf]
    %v190 = vld [vmem:[#allocation4 + $0x8] sm:$0xf]
    %v191 = vld [vmem:[#allocation4 + $0xc] sm:$0xf]
    %v192 = vld [vmem:[#allocation4 + $0x10] sm:$0xf]
    %v193 = vld [vmem:[#allocation4 + $0x14] sm:$0xf]
    %v194 = vld [vmem:[#allocation4 + $0x18] sm:$0xf]
    %v195 = vld [vmem:[#allocation4 + $0x1c] sm:$0xf]
    %v196 = vld [vmem:[#allocation4 + $0x20] sm:$0xf]
    %v197 = vld [vmem:[#allocation4 + $0x24] sm:$0xf]
    %v198 = vld [vmem:[#allocation4 + $0x28] sm:$0xf]
    %v199 = vld [vmem:[#allocation4 + $0x2c] sm:$0xf]
    %v200 = vld [vmem:[#allocation4 + $0x30] sm:$0xf]
    %v201 = vld [vmem:[#allocation4 + $0x34] sm:$0xf]
    %v202 = vld [vmem:[#allocation4 + $0x38] sm:$0xf]
    %v203 = vld [vmem:[#allocation4 + $0x3c] sm:$0xf]
    %v204 = vld [vmem:[%s4] sm:$0x1]
    %v206 = vperm.slane %v204, 0
    %v224 = vunpack.c.l.b16 %v188
    %v225 = vunpack.c.l.b16 %v189
    %v226 = vunpack.c.l.b16 %v190
    %v227 = vunpack.c.l.b16 %v191
    %v228 = vunpack.c.l.b16 %v192
    %v229 = vunpack.c.l.b16 %v193
    %v230 = vunpack.c.l.b16 %v194
    %v231 = vunpack.c.l.b16 %v195
    %v232 = vunpack.c.l.b16 %v196
    %v233 = vunpack.c.l.b16 %v197
    %v234 = vunpack.c.l.b16 %v198
    %v235 = vunpack.c.l.b16 %v199
    %v236 = vunpack.c.l.b16 %v200
    %v237 = vunpack.c.l.b16 %v201
    %v238 = vunpack.c.l.b16 %v202
    %v239 = vunpack.c.l.b16 %v203
    %v240 = vpack.c.b16 %v225, %v224
    %v241 = vpack.c.b16 %v227, %v226
    %v242 = vpack.c.b16 %v229, %v228
    %v243 = vpack.c.b16 %v231, %v230
    %v244 = vpack.c.b16 %v233, %v232
    %v245 = vpack.c.b16 %v235, %v234
    %v246 = vpack.c.b16 %v237, %v236
    %v247 = vpack.c.b16 %v239, %v238
    %256 = vmatpush.bf16.msra.mxu0 %v247
    %257 = vmatpush.bf16.msra.mxu0 %v246
    %258 = vmatpush.bf16.msra.mxu0 %v245
    %259 = vmatpush.bf16.msra.mxu0 %v244
    %260 = vmatpush.bf16.msra.mxu0 %v243
    %261 = vmatpush.bf16.msra.mxu0 %v242
    %262 = vmatpush.bf16.msra.mxu0 %v241
    %263 = vmatpush.bf16.msra.mxu0 %v240
    %264 = vmatmul.bf16.gmra.mxu0 %v187
    %v265 = vpop.f32.mrf.mxu0
    %v266 = vadd.f32 %v206, %v265
    %v267 = vpop.f32.mrf.mxu0
    %v268 = vadd.f32 %v206, %v267
    %269 = vdwg.mxu0
    %v270 = vmax.f32 %v266, 0.0
    %v271 = vmax.f32 %v268, 0.0
    %v272 = vpack.c.bf16 %v271, %v270
    %v273 = vld [vmem:[#allocation6] sm:$0xf]
    %v274 = vld [vmem:[#allocation6 + $0x4] sm:$0xf]
    %v275 = vld [vmem:[#allocation6 + $0x8] sm:$0xf]
    %v276 = vld [vmem:[#allocation6 + $0xc] sm:$0xf]
    %v277 = vld [vmem:[#allocation6 + $0x10] sm:$0xf]
    %v278 = vld [vmem:[#allocation6 + $0x14] sm:$0xf]
    %v279 = vld [vmem:[#allocation6 + $0x18] sm:$0xf]
    %v280 = vld [vmem:[#allocation6 + $0x1c] sm:$0xf]
    %v281 = vld [vmem:[#allocation6 + $0x20] sm:$0xf]
    %v282 = vld [vmem:[#allocation6 + $0x24] sm:$0xf]
    %v283 = vld [vmem:[#allocation6 + $0x28] sm:$0xf]
    %v284 = vld [vmem:[#allocation6 + $0x2c] sm:$0xf]
    %v285 = vld [vmem:[#allocation6 + $0x30] sm:$0xf]
    %v286 = vld [vmem:[#allocation6 + $0x34] sm:$0xf]
    %v287 = vld [vmem:[#allocation6 + $0x38] sm:$0xf]
    %v288 = vld [vmem:[#allocation6 + $0x3c] sm:$0xf]
    %v289 = vld [vmem:[%s6] sm:$0x1]
    %v291 = vperm.slane %v289, 0
    %v309 = vunpack.c.l.b16 %v273
    %v310 = vunpack.c.l.b16 %v274
    %v311 = vunpack.c.l.b16 %v275
    %v312 = vunpack.c.l.b16 %v276
    %v313 = vunpack.c.l.b16 %v277
    %v314 = vunpack.c.l.b16 %v278
    %v315 = vunpack.c.l.b16 %v279
    %v316 = vunpack.c.l.b16 %v280
    %v317 = vunpack.c.l.b16 %v281
    %v318 = vunpack.c.l.b16 %v282
    %v319 = vunpack.c.l.b16 %v283
    %v320 = vunpack.c.l.b16 %v284
    %v321 = vunpack.c.l.b16 %v285
    %v322 = vunpack.c.l.b16 %v286
    %v323 = vunpack.c.l.b16 %v287
    %v324 = vunpack.c.l.b16 %v288
    %v325 = vpack.c.b16 %v310, %v309
    %v326 = vpack.c.b16 %v312, %v311
    %v327 = vpack.c.b16 %v314, %v313
    %v328 = vpack.c.b16 %v316, %v315
    %v329 = vpack.c.b16 %v318, %v317
    %v330 = vpack.c.b16 %v320, %v319
    %v331 = vpack.c.b16 %v322, %v321
    %v332 = vpack.c.b16 %v324, %v323
    %341 = vmatpush.bf16.msra.mxu0 %v332
    %342 = vmatpush.bf16.msra.mxu0 %v331
    %343 = vmatpush.bf16.msra.mxu0 %v330
    %344 = vmatpush.bf16.msra.mxu0 %v329
    %345 = vmatpush.bf16.msra.mxu0 %v328
    %346 = vmatpush.bf16.msra.mxu0 %v327
    %347 = vmatpush.bf16.msra.mxu0 %v326
    %348 = vmatpush.bf16.msra.mxu0 %v325
    %349 = vmatmul.bf16.gmra.mxu0 %v272
    %v350 = vpop.f32.mrf.mxu0
    %v351 = vadd.f32 %v291, %v350
    %v352 = vpop.f32.mrf.mxu0
    %v353 = vadd.f32 %v291, %v352
    %354 = vdwg.mxu0
    %v355 = vmax.f32 %v351, 0.0
    %v356 = vmax.f32 %v353, 0.0
    %v357 = vpack.c.bf16 %v356, %v355
    %v358 = vld [vmem:[#allocation7] sm:$0xf]
    %v359 = vld [vmem:[#allocation7 + $0x4] sm:$0xf]
    %v360 = vld [vmem:[#allocation7 + $0x8] sm:$0xf]
    %v361 = vld [vmem:[#allocation7 + $0xc] sm:$0xf]
    %v362 = vld [vmem:[#allocation7 + $0x10] sm:$0xf]
    %v363 = vld [vmem:[#allocation7 + $0x14] sm:$0xf]
    %v364 = vld [vmem:[#allocation7 + $0x18] sm:$0xf]
    %v365 = vld [vmem:[#allocation7 + $0x1c] sm:$0xf]
    %v366 = vld [vmem:[#allocation7 + $0x20] sm:$0xf]
    %v367 = vld [vmem:[#allocation7 + $0x24] sm:$0xf]
    %v368 = vld [vmem:[#allocation7 + $0x28] sm:$0xf]
    %v369 = vld [vmem:[#allocation7 + $0x2c] sm:$0xf]
    %v370 = vld [vmem:[#allocation7 + $0x30] sm:$0xf]
    %v371 = vld [vmem:[#allocation7 + $0x34] sm:$0xf]
    %v372 = vld [vmem:[#allocation7 + $0x38] sm:$0xf]
    %v373 = vld [vmem:[#allocation7 + $0x3c] sm:$0xf]
    %v374 = vld [vmem:[%s8] sm:$0x1]
    %v376 = vperm.slane %v374, 0
    %v394 = vunpack.c.l.b16 %v358
    %v395 = vunpack.c.l.b16 %v359
    %v396 = vunpack.c.l.b16 %v360
    %v397 = vunpack.c.l.b16 %v361
    %v398 = vunpack.c.l.b16 %v362
    %v399 = vunpack.c.l.b16 %v363
    %v400 = vunpack.c.l.b16 %v364
    %v401 = vunpack.c.l.b16 %v365
    %v402 = vunpack.c.l.b16 %v366
    %v403 = vunpack.c.l.b16 %v367
    %v404 = vunpack.c.l.b16 %v368
    %v405 = vunpack.c.l.b16 %v369
    %v406 = vunpack.c.l.b16 %v370
    %v407 = vunpack.c.l.b16 %v371
    %v408 = vunpack.c.l.b16 %v372
    %v409 = vunpack.c.l.b16 %v373
    %v410 = vpack.c.b16 %v395, %v394
    %v411 = vpack.c.b16 %v397, %v396
    %v412 = vpack.c.b16 %v399, %v398
    %v413 = vpack.c.b16 %v401, %v400
    %v414 = vpack.c.b16 %v403, %v402
    %v415 = vpack.c.b16 %v405, %v404
    %v416 = vpack.c.b16 %v407, %v406
    %v417 = vpack.c.b16 %v409, %v408
    %426 = vmatpush.bf16.msra.mxu0 %v417
    %427 = vmatpush.bf16.msra.mxu0 %v416
    %428 = vmatpush.bf16.msra.mxu0 %v415
    %429 = vmatpush.bf16.msra.mxu0 %v414
    %430 = vmatpush.bf16.msra.mxu0 %v413
    %431 = vmatpush.bf16.msra.mxu0 %v412
    %432 = vmatpush.bf16.msra.mxu0 %v411
    %433 = vmatpush.bf16.msra.mxu0 %v410
    %434 = vmatmul.bf16.gmra.mxu0 %v357
    %v435 = vpop.f32.mrf.mxu0
    %v436 = vadd.f32 %v376, %v435
    %v437 = vpop.f32.mrf.mxu0
    %v438 = vadd.f32 %v376, %v437
    %439 = vdwg.mxu0
    %v440 = vlaneseq
    %v441 = vand.u32 %v440, 127
    %vm442 = vcmp.lt.s32.totalorder %v441, 4
    %v443 = vsel %vm442, %v436, -1e+30
    %v444 = vsel %vm442, %v438, -1e+30
    %445 = vmax.xlane.f32.xlu0 %v443
    %v446 = vpop.xlane.xlu0 %445
    %447 = vmax.xlane.f32.xlu0 %v444
    %v448 = vpop.xlane.xlu0 %447
    %v449 = vsub.f32 %v443, %v446
    %v450 = vsub.f32 %v444, %v448
    %v451 = vmul.f32 %v449, 1.442695
    %v452 = vpow.pop %v451
    %v453 = vmul.f32 %v450, 1.442695
    %v454 = vpow.pop %v453
    %v455 = vsel %vm442, %v452, 0.0
    %v456 = vsel %vm442, %v454, 0.0
    %457 = vadd.xlane.f32.xlu0 %v455
    %v458 = vpop.xlane.xlu0 %457
    %459 = vadd.xlane.f32.xlu0 %v456
    %v460 = vpop.xlane.xlu0 %459
    %v461 = vrcp.pop %v458
    %v462 = vrcp.pop %v460
    %v463 = vmul.f32 %v455, %v461
    %v464 = vmul.f32 %v456, %v462
    %465 = vst [vmem:[%s9] sm:$0xff] %v463
    %466 = vst [vmem:[%s9 + $0x8] sm:$0xff] %v464
    // Predicated region
    $region54: #{mlp_forward.1} parent=1 // pred_check
      _
    $region55: #{mlp_forward.1} parent=1 // pred_check_branch
      %468 = sbr.rel (0) target = $region57
    $region56: #{mlp_forward.1} parent=1 // pred_region
      _
    $region57: #{mlp_forward.1} parent=1 // pred_fallthru
      _
    // Predicated region
    $region58: #{mlp_forward.1} parent=1 // pred_check
      _
    $region59: #{mlp_forward.1} parent=1 // pred_check_branch
      %470 = sbr.rel (0) target = $region61
    $region60: #{mlp_forward.1} parent=1 // pred_region
      _
    $region61: #{mlp_forward.1} parent=1 // pred_fallthru
      _
    %471 = vsyncpa [#allocation3], 1
    %472 = vsyncpa [#allocation5], 1
    %473 = vsyncpa [#allocation8], 1

</llo_original>
